<compile_context>
chip_gen: v7x
topology: tpu7x:2x2x1
jax: 0.10.0
libtpu: 0.0.40
codegen_flags: <defaults>
</compile_context>

<pallas_src>
import jax
import jax.numpy as jnp
from jax.experimental import pallas as pl
from jax.experimental.pallas import tpu as pltpu


def _mlp_kernel(x_ref, w1t_ref, b1_ref, w2t_ref, b2_ref, o_ref):
    """Per-pixel MLP in channels-on-sublane / pixels-on-lane layout.

    x_ref : (1, C_in, TILE_P)   w1t_ref: (HID, C_in)   b1_ref: (HID, 1)
    w2t_ref: (C_out, HID)       b2_ref : (C_out, 1)    o_ref : (1, C_out, TILE_P)
    """
    x = x_ref[0]                                              # (C_in, TILE_P)
    h = jnp.dot(w1t_ref[...], x, preferred_element_type=jnp.float32)
    h = jnp.maximum(h + b1_ref[...], 0.0)                     # (HID, TILE_P)
    y = jnp.dot(w2t_ref[...], h, preferred_element_type=jnp.float32)
    y = y + b2_ref[...]                                       # (C_out, TILE_P)
    o_ref[0] = y.astype(o_ref.dtype)


def inner_model_pallas(x_nchw, w1, b1, w2, b2, *, tile_p_target=16384):
    """Runs the wrapped model's compute in a Pallas kernel.

    x_nchw: [N, C_in, H, W] float32 (PyTorch NCHW convention)
    w1:     [C_in, HID]   b1: [1, HID]
    w2:     [HID, C_out]  b2: [1, C_out]
    returns [N, C_out, H, W]
    """
    N, C_in, H, W = x_nchw.shape
    HID = w1.shape[1]
    C_out = w2.shape[1]
    P_img = H * W

    # Free reshape: NCHW already has pixels contiguous in the trailing dims,
    # so (N, C_in, H*W) costs nothing and puts pixels on the lane axis.
    x_r = x_nchw.reshape(N, C_in, P_img)

    # One-time tiny transposes so the kernel works in (C, P) layout.
    w1t = jnp.transpose(w1)   # (HID, C_in)
    w2t = jnp.transpose(w2)   # (C_out, HID)
    b1c = jnp.transpose(b1)   # (HID, 1)
    b2c = jnp.transpose(b2)   # (C_out, 1)

    # Pixel tile: largest 128-multiple <= target, or full extent for small /
    # non-128-divisible images.  Per-tile live bytes stay well under the
    # smallest per-TC VMEM budget (v7x: 64 MiB physical / 32 MiB scoped).
    if P_img <= tile_p_target or P_img % 128 != 0:
        tile_p = P_img
    else:
        tile_p = (tile_p_target // 128) * 128
    n_ptiles = pl.cdiv(P_img, tile_p)

    out_r = pl.pallas_call(
        _mlp_kernel,
        out_shape=jax.ShapeDtypeStruct((N, C_out, P_img), x_r.dtype),
        grid=(N, n_ptiles),
        in_specs=[
            pl.BlockSpec((1, C_in, tile_p), lambda n, p: (n, 0, p)),
            # Weights / biases stay resident across the whole grid.
            pl.BlockSpec((HID, C_in), lambda n, p: (0, 0)),
            pl.BlockSpec((HID, 1), lambda n, p: (0, 0)),
            pl.BlockSpec((C_out, HID), lambda n, p: (0, 0)),
            pl.BlockSpec((C_out, 1), lambda n, p: (0, 0)),
        ],
        out_specs=pl.BlockSpec((1, C_out, tile_p), lambda n, p: (n, 0, p)),
        compiler_params=pltpu.CompilerParams(
            # Fully independent tiles: both axes parallel (megacore on v7x).
            dimension_semantics=("parallel", "parallel"),
            vmem_limit_bytes=64 << 20,
        ),
    )(x_r, w1t, b1c, w2t, b2c)

    # Free reshape back to NCHW.
    return out_r.reshape(N, C_out, H, W)


class GenericModelWrapperPallas:
    """JAX/Pallas equivalent of terratorch's GenericModelWrapper.

    forward(*args, **kwargs) forwards everything to the wrapped model and
    wraps the raw output in a ModelOutput-style container (here a dict with
    key "output", matching ModelOutput(model_output) semantics).
    """

    def __init__(self, model_fn):
        self.model = model_fn

    def freeze_encoder(self):
        # Parameters are plain JAX arrays (non-trainable by construction);
        # freezing is a no-op here.
        pass

    def freeze_decoder(self):
        pass

    def forward(self, *args, **kwargs):
        input_data = [args[0]]  # mirrors the reference implementation
        del input_data
        model_output = self.model(*args, **kwargs)
        return {"output": model_output}  # ModelOutput(model_output)

    __call__ = forward


if __name__ == "__main__":
    key = jax.random.PRNGKey(0)
    k_x, k_w1, k_b1, k_w2, k_b2 = jax.random.split(key, 5)

    # Small shapes: batch=2, channels=4, spatial=16, hidden=32, out_channels=4.
    N, C_IN, H, W = 2, 4, 16, 16
    HID, C_OUT = 32, 4

    x = jax.random.normal(k_x, (N, C_IN, H, W), dtype=jnp.float32)

    # Deterministic synthetic parameters (1x1 conv == per-pixel linear).
    w1 = jax.random.normal(k_w1, (C_IN, HID), dtype=jnp.float32) * 0.1
    b1 = jax.random.normal(k_b1, (1, HID), dtype=jnp.float32) * 0.01
    w2 = jax.random.normal(k_w2, (HID, C_OUT), dtype=jnp.float32) * 0.1
    b2 = jax.random.normal(k_b2, (1, C_OUT), dtype=jnp.float32) * 0.01

    def wrapped_model(inp):
        return inner_model_pallas(inp, w1, b1, w2, b2)

    wrapper = GenericModelWrapperPallas(wrapped_model)
    out = wrapper(x)
    result = jax.block_until_ready(out["output"])

    # Sanity check against a plain-JAX reference of the inner model.
    x_pix = jnp.transpose(x, (0, 2, 3, 1)).reshape(-1, C_IN)
    ref_pix = jnp.maximum(x_pix @ w1 + b1, 0.0) @ w2 + b2
    ref = jnp.transpose(ref_pix.reshape(N, H, W, C_OUT), (0, 3, 1, 2))
    assert result.shape == (N, C_OUT, H, W)
    assert jnp.allclose(result, ref, atol=1e-5, rtol=1e-5)

    print("KERNEL_OK")
</pallas_src>

<mosaic_0001>
module attributes {stable_mosaic.version = 11 : i64} {
  func.func @_mlp_kernel(%arg0: i32, %arg1: i32, %arg2: memref<1x4x256xf32, #tpu.memory_space<vmem>>, %arg3: memref<32x4xf32, #tpu.memory_space<vmem>>, %arg4: memref<32x1xf32, #tpu.memory_space<vmem>>, %arg5: memref<4x32xf32, #tpu.memory_space<vmem>>, %arg6: memref<4x1xf32, #tpu.memory_space<vmem>>, %arg7: memref<1x4x256xf32, #tpu.memory_space<vmem>>) attributes {dimension_semantics = [#tpu.dimension_semantics<parallel>, #tpu.dimension_semantics<parallel>], iteration_bounds = array<i64: 2, 1>, scalar_prefetch = 0 : i64, scratch_operands = 0 : i64, tpu.core_type = #tpu.core_type<tc>, window_params = [{transform_indices = @transform_0, window_bounds = array<i64: 1, 4, 256>}, {pipeline_mode = #tpu.pipeline_mode<synchronous>, transform_indices = @transform_1, window_bounds = array<i64: 32, 4>}, {pipeline_mode = #tpu.pipeline_mode<synchronous>, transform_indices = @transform_2, window_bounds = array<i64: 32, 1>}, {pipeline_mode = #tpu.pipeline_mode<synchronous>, transform_indices = @transform_3, window_bounds = array<i64: 4, 32>}, {pipeline_mode = #tpu.pipeline_mode<synchronous>, transform_indices = @transform_4, window_bounds = array<i64: 4, 1>}, {transform_indices = @transform_5, window_bounds = array<i64: 1, 4, 256>}]} {
    %c0 = arith.constant 0 : index
    %c0_0 = arith.constant 0 : index
    %c0_1 = arith.constant 0 : index
    %0 = vector.load %arg2[%c0, %c0_0, %c0_1] : memref<1x4x256xf32, #tpu.memory_space<vmem>>, vector<1x4x256xf32>
    %1 = vector.shape_cast %0 : vector<1x4x256xf32> to vector<4x256xf32>
    %c0_2 = arith.constant 0 : index
    %c0_3 = arith.constant 0 : index
    %2 = vector.load %arg3[%c0_2, %c0_3] : memref<32x4xf32, #tpu.memory_space<vmem>>, vector<32x4xf32>
    %cst = arith.constant dense<0.000000e+00> : vector<32x256xf32>
    %3 = tpu.matmul %2, %1, %cst {dimension_numbers = #tpu.dot_dimension_numbers<[1], [0], [0], [1], [0, 0, 1, 1], [], []>} : vector<32x4xf32>, vector<4x256xf32>, vector<32x256xf32> -> vector<32x256xf32>
    %c0_4 = arith.constant 0 : index
    %c0_5 = arith.constant 0 : index
    %4 = vector.load %arg4[%c0_4, %c0_5] : memref<32x1xf32, #tpu.memory_space<vmem>>, vector<32x1xf32>
    %5 = vector.broadcast %4 : vector<32x1xf32> to vector<32x256xf32>
    %6 = arith.addf %3, %5 : vector<32x256xf32>
    %cst_6 = arith.constant 0.000000e+00 : f32
    %7 = vector.broadcast %cst_6 : f32 to vector<32x256xf32>
    %8 = arith.maximumf %6, %7 : vector<32x256xf32>
    %c0_7 = arith.constant 0 : index
    %c0_8 = arith.constant 0 : index
    %9 = vector.load %arg5[%c0_7, %c0_8] : memref<4x32xf32, #tpu.memory_space<vmem>>, vector<4x32xf32>
    %cst_9 = arith.constant dense<0.000000e+00> : vector<4x256xf32>
    %10 = tpu.matmul %9, %8, %cst_9 {dimension_numbers = #tpu.dot_dimension_numbers<[1], [0], [0], [1], [0, 0, 1, 1], [], []>} : vector<4x32xf32>, vector<32x256xf32>, vector<4x256xf32> -> vector<4x256xf32>
    %c0_10 = arith.constant 0 : index
    %c0_11 = arith.constant 0 : index
    %11 = vector.load %arg6[%c0_10, %c0_11] : memref<4x1xf32, #tpu.memory_space<vmem>>, vector<4x1xf32>
    %12 = vector.broadcast %11 : vector<4x1xf32> to vector<4x256xf32>
    %13 = arith.addf %10, %12 : vector<4x256xf32>
    %c0_12 = arith.constant 0 : index
    %c0_13 = arith.constant 0 : index
    %c0_14 = arith.constant 0 : index
    %14 = vector.load %arg7[%c0_12, %c0_13, %c0_14] : memref<1x4x256xf32, #tpu.memory_space<vmem>>, vector<1x4x256xf32>
    %15 = vector.shape_cast %14 : vector<1x4x256xf32> to vector<4x256xf32>
    %16 = vector.shape_cast %13 : vector<4x256xf32> to vector<1x4x256xf32>
    tpu.vector_store %arg7[%c0_12, %c0_13, %c0_14], %16 {strides = array<i32>} : memref<1x4x256xf32, #tpu.memory_space<vmem>>, vector<1x4x256xf32>,
    return
  }
  func.func @transform_0(%arg0: i32, %arg1: i32) -> (i32, i32, i32) {
    %c0_i32 = arith.constant 0 : i32
    %c0_i32_0 = arith.constant 0 : i32
    return %arg0, %c0_i32, %arg1 : i32, i32, i32
  }
  func.func @transform_1(%arg0: i32, %arg1: i32) -> (i32, i32) {
    %c0_i32 = arith.constant 0 : i32
    %c0_i32_0 = arith.constant 0 : i32
    %c0_i32_1 = arith.constant 0 : i32
    return %c0_i32, %c0_i32_0 : i32, i32
  }
  func.func @transform_2(%arg0: i32, %arg1: i32) -> (i32, i32) {
    %c0_i32 = arith.constant 0 : i32
    %c0_i32_0 = arith.constant 0 : i32
    %c0_i32_1 = arith.constant 0 : i32
    return %c0_i32, %c0_i32_0 : i32, i32
  }
  func.func @transform_3(%arg0: i32, %arg1: i32) -> (i32, i32) {
    %c0_i32 = arith.constant 0 : i32
    %c0_i32_0 = arith.constant 0 : i32
    %c0_i32_1 = arith.constant 0 : i32
    return %c0_i32, %c0_i32_0 : i32, i32
  }
  func.func @transform_4(%arg0: i32, %arg1: i32) -> (i32, i32) {
    %c0_i32 = arith.constant 0 : i32
    %c0_i32_0 = arith.constant 0 : i32
    %c0_i32_1 = arith.constant 0 : i32
    return %c0_i32, %c0_i32_0 : i32, i32
  }
  func.func @transform_5(%arg0: i32, %arg1: i32) -> (i32, i32, i32) {
    %c0_i32 = arith.constant 0 : i32
    %c0_i32_0 = arith.constant 0 : i32
    return %arg0, %c0_i32, %arg1 : i32, i32, i32
  }
}

</mosaic_0001>

<llo_original>
// kernel: tpu_custom_call.1
$region0: #{tpu_custom_call.1}
  #allocation0 [shape = 'u32[]', space=smem, size = 0x4, offset = 0x4, fixed_abs, tag = 'smem constant byte address 0x4 - core index']
  #allocation1 [shape = 'u32[144,128]{1,0:T(1,128)}', space=vmem, size = 0x12000, scoped, tag = 'internal scratch']
  %s0 = inlined_call_operand.hbm [shape: f32[2,4,256], index: 0, kind: input, shape index: {}]
  %s1 = inlined_call_operand.hbm [shape: f32[32,4], index: 1, kind: input, shape index: {}]
  %s2 = inlined_call_operand.hbm [shape: f32[32,1], index: 2, kind: input, shape index: {}]
  %s3 = inlined_call_operand.hbm [shape: f32[4,32], index: 3, kind: input, shape index: {}]
  %s4 = inlined_call_operand.hbm [shape: f32[4,1], index: 4, kind: input, shape index: {}]
  %s5 = inlined_call_operand.hbm [shape: f32[2,4,256], index: 5, kind: output, shape index: {}]
  %s6 = sld [smem:[#allocation0]]
  $region73: #{tpu_custom_call.1} parent=0
    _
  %s8 = ssub.s32 1, %s6
  %s9 = scalar_select 0, %s8, %s6
  $region1: #{tpu_custom_call.1} parent=0
    #allocation2 [shape = 'u8[8192]{0}', space=vmem, size = 0x2000, scoped, tag = 'input window, operand 0']
    #allocation3 [shape = 's32[2]{0}', space=sflag, size = 0x8, scoped, tag = 'scoped memory for tpu_custom_call.1']
    #allocation4 [shape = 's32[2]{0}', space=sflag, size = 0x8, scoped, tag = 'scoped memory for tpu_custom_call.1']
    #allocation5 [shape = 'u8[16384]{0}', space=vmem, size = 0x4000, scoped, tag = 'input window, operand 1, single buffered']
    #allocation6 [shape = 's32[1]{0}', space=sflag, size = 0x4, scoped, tag = 'scoped memory for tpu_custom_call.1']
    #allocation7 [shape = 'u8[16384]{0}', space=vmem, size = 0x4000, scoped, tag = 'input window, operand 2, single buffered']
    #allocation8 [shape = 'u8[2048]{0}', space=vmem, size = 0x800, scoped, tag = 'input window, operand 3, single buffered']
    #allocation9 [shape = 's32[1]{0}', space=sflag, size = 0x4, scoped, tag = 'scoped memory for tpu_custom_call.1']
    #allocation10 [shape = 'u8[2048]{0}', space=vmem, size = 0x800, scoped, tag = 'input window, operand 4, single buffered']
    #allocation11 [shape = 'u8[8192]{0}', space=vmem, size = 0x2000, scoped, tag = 'output window, operand 0']
    %10 = vsyncpa [#allocation3], 0
    %s11 = scalar_lea.sflag [#allocation3], 1
    %12 = vsyncpa %s11, 0
    %13 = vsyncpa [#allocation6], 0
    %14 = vsyncpa [#allocation9], 0
    %15 = vsyncpa [#allocation4], 0
    %s16 = scalar_lea.sflag [#allocation4], 1
    %17 = vsyncpa %s16, 0
    loop: start=0, step=1, limit=4
    $region2: #{tpu_custom_call.1} parent=1 // loop_pre_header
      _
    $region3: #{tpu_custom_call.1} parent=1 // loop_header
      %s19 = sphi 0, %s23
      %p20 = scmp.ge.s32.totalorder %s19, 4
      %s26 = sphi 0, %s38
      %s27 = sphi 0, %s34
      %s28 = sphi 0, %s26
      %s29 = sphi 0, %s27
      %s30 = sphi 0, %s28
      %s31 = sphi 0, %s29
      %s43 = sphi 0, %s45
      %s46 = sphi 0, %s43
      %s47 = sphi 0, %s46
      %s63 = sphi 0, %s47
      %s67 = sphi 0, %s67
      %s69 = sphi 0, %s67
      %s70 = sphi 0, %s69
      %s84 = sphi 0, %s70
      %s88 = sphi 0, %s88
      %s90 = sphi 0, %s88
      %s91 = sphi 0, %s90
      %s105 = sphi 0, %s91
      %s109 = sphi 0, %s109
      %s111 = sphi 0, %s109
      %s112 = sphi 0, %s111
      %s126 = sphi 0, %s112
      %s130 = sphi 0, %s130
      %s132 = sphi 0, %s130
      %s133 = sphi 0, %s132
      %s147 = sphi 0, %s133
      %s155 = sphi 0, %s157
      %s158 = sphi 0, %s155
      %s159 = sphi 0, %s158
      %s175 = sphi 0, %s159
    $region4: #{tpu_custom_call.1} parent=1 // loop_header_branch
      %22 = sbr.rel (%p20) target = $region8
    $region5: #{tpu_custom_call.1} parent=1 // loop_body
      %s24 = ssub.s32 %s19, 1
      %s25 = ssub.s32 %s19, 2
      %s32 = sadd.s32 1, %s27
      %p33 = scmp.ge.s32.totalorder %s32, 1
      %s34 = scalar_select %p33, 0, %s32
      %s35 = sadd.s32 1, %s26
      %s36 = scalar_select %p33, %s35, %s26
      %p37 = scmp.ge.s32.totalorder %s36, 2
      %s38 = scalar_select %p37, 0, %s36
      %s39 = ssub.s32 %s26, %s38
      %s40 = ssub.s32 %s27, %s34
      %s41 = sor.u32 %s39, %s40
      %p42 = scmp.eq.s32.totalorder %s41, 0
      %s44 = sadd.s32 %s43, 1
      %s45 = scalar_select %p42, %s43, %s44
      %p48 = pneg %p42
      %p49 = scmp.eq.s32.totalorder %s19, 1
      %p50 = por %p48, %p49
      %p51 = scmp.ne.s32.totalorder %s43, %s46
      %p52 = scmp.eq.s32.totalorder %s19, 0
      %p53 = por %p51, %p52
      %p54 = scmp.ne.s32.totalorder %s43, %s46
      %p55 = scmp.eq.s32.totalorder %s24, 1
      %p56 = por %p54, %p55
      %p57 = scmp.ne.s32.totalorder %s46, %s47
      %p58 = scmp.eq.s32.totalorder %s24, 0
      %p59 = por %p57, %p58
      %p60 = scmp.ne.s32.totalorder %s46, %s47
      %p61 = scmp.eq.s32.totalorder %s25, 1
      %p62 = por %p60, %p61
      %p64 = scmp.ne.s32.totalorder %s47, %s63
      %p65 = scmp.eq.s32.totalorder %s25, 0
      %p66 = por %p64, %p65
      %s68 = sadd.s32 %s67, 1
      %p71 = scmp.eq.s32.totalorder %s19, 1
      %p72 = scmp.ne.s32.totalorder %s67, %s69
      %p73 = scmp.eq.s32.totalorder %s19, 0
      %p74 = por %p72, %p73
      %p75 = scmp.ne.s32.totalorder %s67, %s69
      %p76 = scmp.eq.s32.totalorder %s24, 1
      %p77 = por %p75, %p76
      %p78 = scmp.ne.s32.totalorder %s69, %s70
      %p79 = scmp.eq.s32.totalorder %s24, 0
      %p80 = por %p78, %p79
      %p81 = scmp.ne.s32.totalorder %s69, %s70
      %p82 = scmp.eq.s32.totalorder %s25, 1
      %p83 = por %p81, %p82
      %p85 = scmp.ne.s32.totalorder %s70, %s84
      %p86 = scmp.eq.s32.totalorder %s25, 0
      %p87 = por %p85, %p86
      %s89 = sadd.s32 %s88, 1
      %p92 = scmp.eq.s32.totalorder %s19, 1
      %p93 = scmp.ne.s32.totalorder %s88, %s90
      %p94 = scmp.eq.s32.totalorder %s19, 0
      %p95 = por %p93, %p94
      %p96 = scmp.ne.s32.totalorder %s88, %s90
      %p97 = scmp.eq.s32.totalorder %s24, 1
      %p98 = por %p96, %p97
      %p99 = scmp.ne.s32.totalorder %s90, %s91
      %p100 = scmp.eq.s32.totalorder %s24, 0
      %p101 = por %p99, %p100
      %p102 = scmp.ne.s32.totalorder %s90, %s91
      %p103 = scmp.eq.s32.totalorder %s25, 1
      %p104 = por %p102, %p103
      %p106 = scmp.ne.s32.totalorder %s91, %s105
      %p107 = scmp.eq.s32.totalorder %s25, 0
      %p108 = por %p106, %p107
      %s110 = sadd.s32 %s109, 1
      %p113 = scmp.eq.s32.totalorder %s19, 1
      %p114 = scmp.ne.s32.totalorder %s109, %s111
      %p115 = scmp.eq.s32.totalorder %s19, 0
      %p116 = por %p114, %p115
      %p117 = scmp.ne.s32.totalorder %s109, %s111
      %p118 = scmp.eq.s32.totalorder %s24, 1
      %p119 = por %p117, %p118
      %p120 = scmp.ne.s32.totalorder %s111, %s112
      %p121 = scmp.eq.s32.totalorder %s24, 0
      %p122 = por %p120, %p121
      %p123 = scmp.ne.s32.totalorder %s111, %s112
      %p124 = scmp.eq.s32.totalorder %s25, 1
      %p125 = por %p123, %p124
      %p127 = scmp.ne.s32.totalorder %s112, %s126
      %p128 = scmp.eq.s32.totalorder %s25, 0
      %p129 = por %p127, %p128
      %s131 = sadd.s32 %s130, 1
      %p134 = scmp.eq.s32.totalorder %s19, 1
      %p135 = scmp.ne.s32.totalorder %s130, %s132
      %p136 = scmp.eq.s32.totalorder %s19, 0
      %p137 = por %p135, %p136
      %p138 = scmp.ne.s32.totalorder %s130, %s132
      %p139 = scmp.eq.s32.totalorder %s24, 1
      %p140 = por %p138, %p139
      %p141 = scmp.ne.s32.totalorder %s132, %s133
      %p142 = scmp.eq.s32.totalorder %s24, 0
      %p143 = por %p141, %p142
      %p144 = scmp.ne.s32.totalorder %s132, %s133
      %p145 = scmp.eq.s32.totalorder %s25, 1
      %p146 = por %p144, %p145
      %p148 = scmp.ne.s32.totalorder %s133, %s147
      %p149 = scmp.eq.s32.totalorder %s25, 0
      %p150 = por %p148, %p149
      %s151 = ssub.s32 %s26, %s38
      %s152 = ssub.s32 %s27, %s34
      %s153 = sor.u32 %s151, %s152
      %p154 = scmp.eq.s32.totalorder %s153, 0
      %s156 = sadd.s32 %s155, 1
      %s157 = scalar_select %p154, %s155, %s156
      %p160 = pneg %p154
      %p161 = scmp.eq.s32.totalorder %s19, 1
      %p162 = por %p160, %p161
      %p163 = scmp.ne.s32.totalorder %s155, %s158
      %p164 = scmp.eq.s32.totalorder %s19, 0
      %p165 = por %p163, %p164
      %p166 = scmp.ne.s32.totalorder %s155, %s158
      %p167 = scmp.eq.s32.totalorder %s24, 1
      %p168 = por %p166, %p167
      %p169 = scmp.ne.s32.totalorder %s158, %s159
      %p170 = scmp.eq.s32.totalorder %s24, 0
      %p171 = por %p169, %p170
      %p172 = scmp.ne.s32.totalorder %s158, %s159
      %p173 = scmp.eq.s32.totalorder %s25, 1
      %p174 = por %p172, %p173
      %p176 = scmp.ne.s32.totalorder %s159, %s175
      %p177 = scmp.eq.s32.totalorder %s25, 0
      %p178 = por %p176, %p177
      %p179 = scmp.le.s32.totalorder 1, %s19
      %p180 = scmp.lt.s32.totalorder %s19, 3
      %p181 = pnand %p179, %p180
      %p182 = pneg %p181
      // Predicated region
      $region9: #{tpu_custom_call.1} parent=5 // pred_check
        _
      $region10: #{tpu_custom_call.1} parent=5 // pred_check_branch
        %184 = sbr.rel (%p181) target = $region12
      $region11: #{tpu_custom_call.1} parent=5 // pred_region
        %s185 = ssub.s32 %s19, 1
        // Predicated region
        $region13: #{tpu_custom_call.1} parent=11 // pred_check
          %p186 = pneg %p80
        $region14: #{tpu_custom_call.1} parent=11 // pred_check_branch
          %188 = sbr.rel (%p186) target = $region16
        $region15: #{tpu_custom_call.1} parent=11 // pred_region
          %s190 = ssub.s32 512, 512
          %191 = vsyncadd [#allocation6], %s190
          %s192 = sshll.u32 [#allocation5], 4
          %s193 = int_to_ptr.vmem [resolvable:$true] %s192
          %198 = dma.hbm_to_vmem [thread:$0]  %s1, 512, %s193, [#allocation6], 128, 128, 8
        $region16: #{tpu_custom_call.1} parent=11 // pred_fallthru
          _
        // Predicated region
        $region17: #{tpu_custom_call.1} parent=11 // pred_check
          %p199 = pneg %p101
        $region18: #{tpu_custom_call.1} parent=11 // pred_check_branch
          %201 = sbr.rel (%p199) target = $region20
        $region19: #{tpu_custom_call.1} parent=11 // pred_region
          %s203 = ssub.s32 512, 512
          %204 = vsyncadd [#allocation6], %s203
          %s205 = sshll.u32 [#allocation7], 4
          %s206 = int_to_ptr.vmem [resolvable:$true] %s205
          %211 = dma.hbm_to_vmem [thread:$0]  %s2, 512, %s206, [#allocation6], 128, 128, 8
        $region20: #{tpu_custom_call.1} parent=11 // pred_fallthru
          _
        // Predicated region
        $region21: #{tpu_custom_call.1} parent=11 // pred_check
          %p212 = pneg %p122
        $region22: #{tpu_custom_call.1} parent=11 // pred_check_branch
          %214 = sbr.rel (%p212) target = $region24
        $region23: #{tpu_custom_call.1} parent=11 // pred_region
          %s216 = ssub.s32 64, 64
          %217 = vsyncadd [#allocation9], %s216
          %s219 = sshll.u32 [#allocation8], 4
          %s220 = int_to_ptr.vmem [resolvable:$true] %s219
          %222 = dma.hbm_to_vmem [thread:$0]  %s3, 64, %s220, [#allocation9]
        $region24: #{tpu_custom_call.1} parent=11 // pred_fallthru
          _
        // Predicated region
        $region25: #{tpu_custom_call.1} parent=11 // pred_check
          %p223 = pneg %p143
        $region26: #{tpu_custom_call.1} parent=11 // pred_check_branch
          %225 = sbr.rel (%p223) target = $region28
        $region27: #{tpu_custom_call.1} parent=11 // pred_region
          %s227 = ssub.s32 64, 64
          %228 = vsyncadd [#allocation9], %s227
          %s230 = sshll.u32 [#allocation10], 4
          %s231 = int_to_ptr.vmem [resolvable:$true] %s230
          %233 = dma.hbm_to_vmem [thread:$0]  %s4, 64, %s231, [#allocation9]
        $region28: #{tpu_custom_call.1} parent=11 // pred_fallthru
          _
      $region12: #{tpu_custom_call.1} parent=5 // pred_fallthru
        _
      %p234 = scmp.lt.s32.totalorder %s19, 2
      // Predicated region
      $region29: #{tpu_custom_call.1} parent=5 // pred_check
        %p235 = pneg %p234
      $region30: #{tpu_custom_call.1} parent=5 // pred_check_branch
        %237 = sbr.rel (%p235) target = $region32
      $region31: #{tpu_custom_call.1} parent=5 // pred_region
        // Predicated region
        $region33: #{tpu_custom_call.1} parent=31 // pred_check
          %p238 = pneg %p53
        $region34: #{tpu_custom_call.1} parent=31 // pred_check_branch
          %240 = sbr.rel (%p238) target = $region36
        $region35: #{tpu_custom_call.1} parent=31 // pred_region
          %s241 = sand.u32 %s43, 1
          %s242 = scalar_lea.sflag [#allocation3], %s241
          %s243 = sand.u32 %s43, 1
          %s244 = smul.addr %s243, 8
          %s245 = scalar_lea.vmem [#allocation2], %s244
          %s246 = smul.u32 2, %s27
          %s248 = ssub.s32 128, 128
          %249 = vsyncadd %s242, %s248
          %s250 = smul.addr %s26, 2
          %s251 = sadd.s32 %s246, %s250
          %s252 = smul.addr %s251, 64
          %s253 = scalar_lea.hbm %s0, %s252
          %s255 = sshll.u32 %s245, 4
          %s256 = int_to_ptr.vmem [resolvable:$true] %s255
          %258 = dma.hbm_to_vmem [thread:$0]  %s253, 128, %s256, %s242
        $region36: #{tpu_custom_call.1} parent=31 // pred_fallthru
          _
      $region32: #{tpu_custom_call.1} parent=5 // pred_fallthru
        _
      %p259 = scmp.le.s32.totalorder 1, %s19
      %p260 = scmp.lt.s32.totalorder %s19, 3
      %p261 = pnand %p259, %p260
      %p262 = pneg %p261
      // Predicated region
      $region37: #{tpu_custom_call.1} parent=5 // pred_check
        _
      $region38: #{tpu_custom_call.1} parent=5 // pred_check_branch
        %264 = sbr.rel (%p261) target = $region40
      $region39: #{tpu_custom_call.1} parent=5 // pred_region
        %s265 = ssub.s32 %s19, 1
        %s266 = sand.u32 %s46, 1
        %s267 = scalar_lea.sflag [#allocation3], %s266
        %s268 = sand.u32 %s46, 1
        %s269 = smul.addr %s268, 8
        %s270 = scalar_lea.vmem [#allocation2], %s269
        // Predicated region
        $region41: #{tpu_custom_call.1} parent=39 // pred_check
          %p271 = pneg %p59
        $region42: #{tpu_custom_call.1} parent=39 // pred_check_branch
          %273 = sbr.rel (%p271) target = $region44
        $region43: #{tpu_custom_call.1} parent=39 // pred_region
          %274 = dma.done %s267, 128
        $region44: #{tpu_custom_call.1} parent=39 // pred_fallthru
          _
        // Predicated region
        $region45: #{tpu_custom_call.1} parent=39 // pred_check
          %p275 = pneg %p80
        $region46: #{tpu_custom_call.1} parent=39 // pred_check_branch
          %277 = sbr.rel (%p275) target = $region48
        $region47: #{tpu_custom_call.1} parent=39 // pred_region
          %278 = dma.done [#allocation6], 512
        $region48: #{tpu_custom_call.1} parent=39 // pred_fallthru
          _
        // Predicated region
        $region49: #{tpu_custom_call.1} parent=39 // pred_check
          %p279 = pneg %p101
        $region50: #{tpu_custom_call.1} parent=39 // pred_check_branch
          %281 = sbr.rel (%p279) target = $region52
        $region51: #{tpu_custom_call.1} parent=39 // pred_region
          %282 = dma.done [#allocation6], 512
        $region52: #{tpu_custom_call.1} parent=39 // pred_fallthru
          _
        // Predicated region
        $region53: #{tpu_custom_call.1} parent=39 // pred_check
          %p283 = pneg %p122
        $region54: #{tpu_custom_call.1} parent=39 // pred_check_branch
          %285 = sbr.rel (%p283) target = $region56
        $region55: #{tpu_custom_call.1} parent=39 // pred_region
          %286 = dma.done [#allocation9], 64
        $region56: #{tpu_custom_call.1} parent=39 // pred_fallthru
          _
        // Predicated region
        $region57: #{tpu_custom_call.1} parent=39 // pred_check
          %p287 = pneg %p143
        $region58: #{tpu_custom_call.1} parent=39 // pred_check_branch
          %289 = sbr.rel (%p287) target = $region60
        $region59: #{tpu_custom_call.1} parent=39 // pred_region
          %290 = dma.done [#allocation9], 64
        $region60: #{tpu_custom_call.1} parent=39 // pred_fallthru
          _
        %s291 = sand.u32 %s46, 1
        %s292 = scalar_lea.sflag [#allocation3], %s291
        %s293 = sand.u32 %s46, 1
        %s294 = smul.addr %s293, 8
        %s295 = scalar_lea.vmem [#allocation2], %s294
        %p296 = pneg %p59
        %p297 = pneg %p56
        %p298 = pneg %p80
        %p299 = pneg %p77
        %p300 = pneg %p101
        %p301 = pneg %p98
        %p302 = pneg %p122
        %p303 = pneg %p119
        %p304 = pneg %p143
        %p305 = pneg %p140
        %p306 = pneg %p171
        %p307 = pneg %p168
        %s308 = sand.u32 %s158, 1
        %s309 = scalar_lea.sflag [#allocation4], %s308
        %s310 = sand.u32 %s158, 1
        %s311 = smul.addr %s310, 8
        %s312 = scalar_lea.vmem [#allocation11], %s311
        %s313 = smul.u32 2, %s29
        %s314 = smul.u32 2, %s29
        %v315 = vld [vmem:[%s270] sm:$0xff]
        %v316 = vld [vmem:[#allocation5] sm:$0xff]
        %v317 = vld [vmem:[#allocation5 + $0x8] sm:$0xff]
        %v318 = vld [vmem:[#allocation5 + $0x10] sm:$0xff]
        %v319 = vld [vmem:[#allocation5 + $0x18] sm:$0xff]
        %v320 = vld [vmem:[#allocation7] sm:$0xff]
        %v321 = vld [vmem:[#allocation7 + $0x8] sm:$0xff]
        %v322 = vld [vmem:[#allocation7 + $0x10] sm:$0xff]
        %v323 = vld [vmem:[#allocation7 + $0x18] sm:$0xff]
        %325 = vset.pattern.permute.xlu0 0
        %326 = vperm.xlu0 %325, %v320
        %v327 = vpop.permute.xlu0 %326
        %330 = vset.pattern.permute.xlu0 0
        %331 = vperm.xlu0 %330, %v321
        %v332 = vpop.permute.xlu0 %331
        %335 = vset.pattern.permute.xlu0 0
        %336 = vperm.xlu0 %335, %v322
        %v337 = vpop.permute.xlu0 %336
        %340 = vset.pattern.permute.xlu0 0
        %341 = vperm.xlu0 %340, %v323
        %v342 = vpop.permute.xlu0 %341
        %v345 = vcombine.high %v315, %v315
        %vm346 = vcmask 31744
        %v348 = vsel %vm346, %v316, 0
        %v351 = vsel %vm346, %v317, 0
        %v354 = vsel %vm346, %v318, 0
        %v357 = vsel %vm346, %v319, 0
        %vm359 = vcmask 1043456
        %v360 = vsel %vm359, %v315, 0
        %v362 = vsel %vm359, %v345, 0
        %364 = vmatprep.subr.mxu0 %v362
        %365 = vmatpush1.msra.mxu0 %v360
        %366 = vmatprep.subr.mxu0 0.0
        %367 = vmatpush1.msra.mxu0 0.0
        %368 = vmatprep.subr.mxu0 0.0
        %369 = vmatpush1.msra.mxu0 0.0
        %370 = vmatprep.subr.mxu0 0.0
        %371 = vmatpush1.msra.mxu0 0.0
        %372 = vmatprep.subr.mxu0 0.0
        %373 = vmatpush1.msra.mxu0 0.0
        %374 = vmatprep.subr.mxu0 0.0
        %375 = vmatpush1.msra.mxu0 0.0
        %376 = vmatprep.subr.mxu0 0.0
        %377 = vmatpush1.msra.mxu0 0.0
        %378 = vmatprep.subr.mxu0 0.0
        %379 = vmatpush1.msra.mxu0 0.0
        %380 = vmatprep.subr.mxu0 0.0
        %381 = vmatpush1.msra.mxu0 0.0
        %382 = vmatprep.subr.mxu0 0.0
        %383 = vmatpush1.msra.mxu0 0.0
        %384 = vmatprep.subr.mxu0 0.0
        %385 = vmatpush1.msra.mxu0 0.0
        %386 = vmatprep.subr.mxu0 0.0
        %387 = vmatpush1.msra.mxu0 0.0
        %388 = vmatprep.subr.mxu0 0.0
        %389 = vmatpush1.msra.mxu0 0.0
        %390 = vmatprep.subr.mxu0 0.0
        %391 = vmatpush1.msra.mxu0 0.0
        %392 = vmatprep.subr.mxu0 0.0
        %393 = vmatpush1.msra.mxu0 0.0
        %394 = vmatprep.subr.mxu0 0.0
        %395 = vmatpush1.msra.mxu0 0.0
        %396 = vmatprep.subr.mxu0 0.0
        %397 = vmatpush1.msra.mxu0 0.0
        %398 = vmatprep.subr.mxu0 0.0
        %399 = vmatpush1.msra.mxu0 0.0
        %400 = vmatprep.subr.mxu0 0.0
        %401 = vmatpush1.msra.mxu0 0.0
        %402 = vmatprep.subr.mxu0 0.0
        %403 = vmatpush1.msra.mxu0 0.0
        %404 = vmatprep.subr.mxu0 0.0
        %405 = vmatpush1.msra.mxu0 0.0
        %406 = vmatprep.subr.mxu0 0.0
        %407 = vmatpush1.msra.mxu0 0.0
        %408 = vmatprep.subr.mxu0 0.0
        %409 = vmatpush1.msra.mxu0 0.0
        %410 = vmatprep.subr.mxu0 0.0
        %411 = vmatpush1.msra.mxu0 0.0
        %412 = vmatprep.subr.mxu0 0.0
        %413 = vmatpush1.msra.mxu0 0.0
        %414 = vmatprep.subr.mxu0 0.0
        %415 = vmatpush1.msra.mxu0 0.0
        %416 = vmatprep.subr.mxu0 0.0
        %417 = vmatpush1.msra.mxu0 0.0
        %418 = vmatprep.subr.mxu0 0.0
        %419 = vmatpush1.msra.mxu0 0.0
        %420 = vmatprep.subr.mxu0 0.0
        %421 = vmatpush1.msra.mxu0 0.0
        %422 = vmatprep.subr.mxu0 0.0
        %423 = vmatpush1.msra.mxu0 0.0
        %424 = vmatprep.subr.mxu0 0.0
        %425 = vmatpush1.msra.mxu0 0.0
        %426 = vmatprep.subr.mxu0 0.0
        %427 = vmatpush1.msra.mxu0 0.0
        %428 = vmatprep.mubr.f32.mxu0 0.0
        %429 = vmatmul.mubr.f32.gmra.mrb[0].mxu0 %v348
        %v430 = vpop.f32.mrb[0].mxu0
        %v431 = vadd.f32 %v327, %v430
        %v432 = vpop.f32.mrb[0].mxu0
        %v433 = vadd.f32 %v327, %v432
        %434 = vmatprep.mubr.f32.mxu0 0.0
        %435 = vmatmul.mubr.f32.gmra.mrb[0].mxu0 %v351
        %v436 = vpop.f32.mrb[0].mxu0
        %v437 = vadd.f32 %v332, %v436
        %v438 = vpop.f32.mrb[0].mxu0
        %v439 = vadd.f32 %v332, %v438
        %440 = vmatprep.mubr.f32.mxu0 0.0
        %441 = vmatmul.mubr.f32.gmra.mrb[0].mxu0 %v354
        %v442 = vpop.f32.mrb[0].mxu0
        %v443 = vadd.f32 %v337, %v442
        %v444 = vpop.f32.mrb[0].mxu0
        %v445 = vadd.f32 %v337, %v444
        %446 = vmatprep.mubr.f32.mxu0 0.0
        %447 = vmatmul.mubr.f32.gmra.mrb[0].mxu0 %v357
        %v448 = vpop.f32.mrb[0].mxu0
        %v449 = vadd.f32 %v342, %v448
        %v450 = vpop.f32.mrb[0].mxu0
        %v451 = vadd.f32 %v342, %v450
        %452 = vdwg.mxu0
        %v453 = vmax.f32 %v431, 0.0
        %v454 = vmax.f32 %v433, 0.0
        %v455 = vmax.f32 %v437, 0.0
        %v456 = vmax.f32 %v439, 0.0
        %v457 = vmax.f32 %v443, 0.0
        %v458 = vmax.f32 %v445, 0.0
        %v459 = vmax.f32 %v449, 0.0
        %v460 = vmax.f32 %v451, 0.0
        %v461 = vld [vmem:[#allocation8] sm:$0xf]
        %v462 = vld [vmem:[#allocation10] sm:$0xf]
        %464 = vset.pattern.permute.xlu0 0
        %465 = vperm.xlu0 %464, %v462
        %v466 = vpop.permute.xlu0 %465
        %vm468 = vcmask 261120
        %v470 = vsel %vm468, %v461, 0
        %472 = vmatprep.subr.mxu0 %v454
        %473 = vmatpush1.msra.mxu0 %v453
        %474 = vmatprep.subr.mxu0 %v456
        %475 = vmatpush1.msra.mxu0 %v455
        %476 = vmatprep.subr.mxu0 %v458
        %477 = vmatpush1.msra.mxu0 %v457
        %478 = vmatprep.subr.mxu0 %v460
        %479 = vmatpush1.msra.mxu0 %v459
        %480 = vmatprep.subr.mxu0 0.0
        %481 = vmatpush1.msra.mxu0 0.0
        %482 = vmatprep.subr.mxu0 0.0
        %483 = vmatpush1.msra.mxu0 0.0
        %484 = vmatprep.subr.mxu0 0.0
        %485 = vmatpush1.msra.mxu0 0.0
        %486 = vmatprep.subr.mxu0 0.0
        %487 = vmatpush1.msra.mxu0 0.0
        %488 = vmatprep.subr.mxu0 0.0
        %489 = vmatpush1.msra.mxu0 0.0
        %490 = vmatprep.subr.mxu0 0.0
        %491 = vmatpush1.msra.mxu0 0.0
        %492 = vmatprep.subr.mxu0 0.0
        %493 = vmatpush1.msra.mxu0 0.0
        %494 = vmatprep.subr.mxu0 0.0
        %495 = vmatpush1.msra.mxu0 0.0
        %496 = vmatprep.subr.mxu0 0.0
        %497 = vmatpush1.msra.mxu0 0.0
        %498 = vmatprep.subr.mxu0 0.0
        %499 = vmatpush1.msra.mxu0 0.0
        %500 = vmatprep.subr.mxu0 0.0
        %501 = vmatpush1.msra.mxu0 0.0
        %502 = vmatprep.subr.mxu0 0.0
        %503 = vmatpush1.msra.mxu0 0.0
        %504 = vmatprep.subr.mxu0 0.0
        %505 = vmatpush1.msra.mxu0 0.0
        %506 = vmatprep.subr.mxu0 0.0
        %507 = vmatpush1.msra.mxu0 0.0
        %508 = vmatprep.subr.mxu0 0.0
        %509 = vmatpush1.msra.mxu0 0.0
        %510 = vmatprep.subr.mxu0 0.0
        %511 = vmatpush1.msra.mxu0 0.0
        %512 = vmatprep.subr.mxu0 0.0
        %513 = vmatpush1.msra.mxu0 0.0
        %514 = vmatprep.subr.mxu0 0.0
        %515 = vmatpush1.msra.mxu0 0.0
        %516 = vmatprep.subr.mxu0 0.0
        %517 = vmatpush1.msra.mxu0 0.0
        %518 = vmatprep.subr.mxu0 0.0
        %519 = vmatpush1.msra.mxu0 0.0
        %520 = vmatprep.subr.mxu0 0.0
        %521 = vmatpush1.msra.mxu0 0.0
        %522 = vmatprep.subr.mxu0 0.0
        %523 = vmatpush1.msra.mxu0 0.0
        %524 = vmatprep.subr.mxu0 0.0
        %525 = vmatpush1.msra.mxu0 0.0
        %526 = vmatprep.subr.mxu0 0.0
        %527 = vmatpush1.msra.mxu0 0.0
        %528 = vmatprep.subr.mxu0 0.0
        %529 = vmatpush1.msra.mxu0 0.0
        %530 = vmatprep.subr.mxu0 0.0
        %531 = vmatpush1.msra.mxu0 0.0
        %532 = vmatprep.subr.mxu0 0.0
        %533 = vmatpush1.msra.mxu0 0.0
        %534 = vmatprep.subr.mxu0 0.0
        %535 = vmatpush1.msra.mxu0 0.0
        %536 = vmatprep.mubr.f32.mxu0 0.0
        %537 = vmatmul.mubr.f32.gmra.mrb[0].mxu0 %v470
        %v538 = vpop.f32.mrb[0].mxu0
        %v539 = vadd.f32 %v466, %v538
        %v540 = vpop.f32.mrb[0].mxu0
        %v541 = vadd.f32 %v466, %v540
        %542 = vdwg.mxu0
        %v545 = vcombine.low %v539, %v541
        %547 = vst [vmem:[%s312] sm:$0xff] %v545
        %s548 = sand.u32 %s158, 1
        %s549 = scalar_lea.sflag [#allocation4], %s548
        %s550 = sand.u32 %s158, 1
        %s551 = smul.addr %s550, 8
        %s552 = scalar_lea.vmem [#allocation11], %s551
        // Predicated region
        $region61: #{tpu_custom_call.1} parent=39 // pred_check
          %p553 = pneg %p168
        $region62: #{tpu_custom_call.1} parent=39 // pred_check_branch
          %555 = sbr.rel (%p553) target = $region64
        $region63: #{tpu_custom_call.1} parent=39 // pred_region
          %s556 = smul.u32 2, %s29
          %s558 = ssub.s32 128, 128
          %559 = vsyncadd %s549, %s558
          %s560 = smul.addr %s28, 2
          %s561 = sadd.s32 %s556, %s560
          %s562 = smul.addr %s561, 64
          %s563 = scalar_lea.hbm %s5, %s562
          %s565 = sshll.u32 %s552, 4
          %s566 = int_to_ptr.vmem [resolvable:$true] %s565
          %568 = dma.vmem_to_hbm [thread:$0]  %s566, 128, %s563, %s549
        $region64: #{tpu_custom_call.1} parent=39 // pred_fallthru
          _
      $region40: #{tpu_custom_call.1} parent=5 // pred_fallthru
        _
      %p569 = scmp.le.s32.totalorder 2, %s19
      // Predicated region
      $region65: #{tpu_custom_call.1} parent=5 // pred_check
        %p570 = pneg %p569
      $region66: #{tpu_custom_call.1} parent=5 // pred_check_branch
        %572 = sbr.rel (%p570) target = $region68
      $region67: #{tpu_custom_call.1} parent=5 // pred_region
        %s573 = ssub.s32 %s19, 2
        // Predicated region
        $region69: #{tpu_custom_call.1} parent=67 // pred_check
          %p574 = pneg %p174
        $region70: #{tpu_custom_call.1} parent=67 // pred_check_branch
          %576 = sbr.rel (%p574) target = $region72
        $region71: #{tpu_custom_call.1} parent=67 // pred_region
          %s577 = sand.u32 %s159, 1
          %s578 = scalar_lea.sflag [#allocation4], %s577
          %s579 = sand.u32 %s159, 1
          %s580 = smul.addr %s579, 8
          %s581 = scalar_lea.vmem [#allocation11], %s580
          %582 = dma.done %s578, 128
        $region72: #{tpu_custom_call.1} parent=67 // pred_fallthru
          _
      $region68: #{tpu_custom_call.1} parent=5 // pred_fallthru
        _
    $region6: #{tpu_custom_call.1} parent=1 // loop_footer
      %s23 = sadd.s32 1, %s19
    $region7: #{tpu_custom_call.1} parent=1 // loop_footer_branch
      %18 = sbr.rel target = $region3
    $region8: #{tpu_custom_call.1} parent=1 // loop_exit
      _
    %583 = vsyncpa [#allocation3], 1
    %s584 = scalar_lea.sflag [#allocation3], 1
    %585 = vsyncpa %s584, 1
    %586 = vsyncpa [#allocation6], 1
    %587 = vsyncpa [#allocation9], 1
    %588 = vsyncpa [#allocation4], 1
    %s589 = scalar_lea.sflag [#allocation4], 1
    %590 = vsyncpa %s589, 1

</llo_original>
